<compile_context>
chip_gen: v7x
topology: tpu7x:2x2x1
jax: 0.10.0
libtpu: 0.0.40
codegen_flags: <defaults>
</compile_context>

<pallas_src>
import jax
import jax.numpy as jnp
from jax.experimental import pallas as pl
from jax.experimental.pallas import tpu as pltpu


def _mlp_kernel(x_ref, w1_ref, b1_ref, w2_ref, b2_ref, o_ref):
    # x tile: (bm, D_in) in its native dtype; cast to the weight dtype (bf16) in-kernel
    # for the MXU.  Both dots accumulate in f32; bias / ReLU / sigmoid stay f32.
    x = x_ref[...].astype(w1_ref.dtype)
    h = jnp.dot(x, w1_ref[...], preferred_element_type=jnp.float32) + b1_ref[...]
    h = jnp.maximum(h, 0.0)                       # ReLU (Dropout = identity in eval mode)
    y = jnp.dot(h.astype(w2_ref.dtype), w2_ref[...],
                preferred_element_type=jnp.float32) + b2_ref[...]
    # NOTE: O < 128 -> masked vst epilogue; output bytes are tiny vs. the x stream.
    o_ref[...] = jax.nn.sigmoid(y).astype(o_ref.dtype)


def linear_mlp_forward(x, w1, b1, w2, b2, *, bm=8192, compute_dtype=jnp.bfloat16):
    """x: [B, D_in] (f32 or bf16). Returns sigmoid(MLP(x)): [B, output_dim] in x.dtype."""
    B, D = x.shape
    H = w1.shape[1]
    O = w2.shape[1]
    out_dtype = x.dtype

    # Batch tile: as large as possible (HBM roofline), multiple of 8 sublanes, but capped
    # at ~ceil(B/2) so the grid has >= 2 steps whenever possible (v7x megacore sharding
    # of the "parallel" batch axis).  Last block may be partial (non-divisible grid);
    # rows are independent and out-of-bounds output rows are never written back.
    half_b = -(-B // 2)                                  # ceil(B / 2)
    bm_eff = max(8, min(bm, ((half_b + 7) // 8) * 8))    # multiple of 8 sublanes
    grid_b = pl.cdiv(B, bm_eff)

    # Weights / biases are tiny (<10 KiB); casting them in the wrapper is negligible.
    w1_c = w1.astype(compute_dtype)
    w2_c = w2.astype(compute_dtype)
    b1_f = b1.astype(jnp.float32).reshape(1, H)
    b2_f = b2.astype(jnp.float32).reshape(1, O)

    w_itemsize = jnp.dtype(compute_dtype).itemsize
    cost = pl.CostEstimate(
        flops=2 * B * D * H + 2 * B * H * O,
        transcendentals=B * O,                               # sigmoid
        bytes_accessed=(B * D * jnp.dtype(x.dtype).itemsize  # x stream (native dtype)
                        + (D * H + H * O) * w_itemsize       # weights
                        + (H + O) * 4                        # biases
                        + B * O * jnp.dtype(out_dtype).itemsize),  # output
    )

    out = pl.pallas_call(
        _mlp_kernel,
        out_shape=jax.ShapeDtypeStruct((B, O), out_dtype),
        grid_spec=pl.GridSpec(
            grid=(grid_b,),
            in_specs=[
                # streamed, double-buffered batch tile (last block may be partial)
                pl.BlockSpec((bm_eff, D), lambda i: (i, 0)),
                # grid-invariant operands: single-buffered to save VMEM
                pl.BlockSpec((D, H), lambda i: (0, 0), pipeline_mode=pl.Buffered(1)),
                pl.BlockSpec((1, H), lambda i: (0, 0), pipeline_mode=pl.Buffered(1)),
                pl.BlockSpec((H, O), lambda i: (0, 0), pipeline_mode=pl.Buffered(1)),
                pl.BlockSpec((1, O), lambda i: (0, 0), pipeline_mode=pl.Buffered(1)),
            ],
            out_specs=pl.BlockSpec((bm_eff, O), lambda i: (i, 0)),
        ),
        compiler_params=pltpu.CompilerParams(
            dimension_semantics=("parallel",),   # megacore-shardable batch axis
        ),
        cost_estimate=cost,
    )(x, w1_c, b1_f, w2_c, b2_f)

    return out


def init_params(key, input_dim, output_dim=2, hidden=128, dtype=jnp.float32):
    """Deterministic PyTorch-style (Kaiming-uniform) init, weights stored transposed."""
    k1, k2, k3, k4 = jax.random.split(key, 4)
    bound1 = 1.0 / jnp.sqrt(input_dim)
    bound2 = 1.0 / jnp.sqrt(hidden)
    w1 = jax.random.uniform(k1, (input_dim, hidden), dtype, -bound1, bound1)
    b1 = jax.random.uniform(k2, (1, hidden), dtype, -bound1, bound1)
    w2 = jax.random.uniform(k3, (hidden, output_dim), dtype, -bound2, bound2)
    b2 = jax.random.uniform(k4, (1, output_dim), dtype, -bound2, bound2)
    return w1, b1, w2, b2


def _reference(x, w1, b1, w2, b2):
    # eval-mode dropout = identity
    return jax.nn.sigmoid(jnp.maximum(x @ w1 + b1, 0.0) @ w2 + b2)


if __name__ == "__main__":
    key = jax.random.PRNGKey(0)
    kx, kp, kx2 = jax.random.split(key, 3)

    input_dim, output_dim = 32, 2
    w1, b1, w2, b2 = init_params(kp, input_dim, output_dim)

    # Small case (single grid step, block == full batch).
    B = 8
    x = jax.random.normal(kx, (B, input_dim), jnp.float32)
    out = jax.block_until_ready(linear_mlp_forward(x, w1, b1, w2, b2))
    ref = _reference(x, w1, b1, w2, b2)
    assert out.shape == (B, output_dim)
    # bf16 MXU compute with f32 accumulation -> loose tolerance vs. the pure-f32 reference.
    assert jnp.allclose(out, ref, atol=2e-2, rtol=0.0), float(jnp.max(jnp.abs(out - ref)))

    # Non-divisible case: B=200 -> bm_eff=104, 2 grid steps, partial last block (no padding).
    B2 = 200
    x2 = jax.random.normal(kx2, (B2, input_dim), jnp.float32)
    out2 = jax.block_until_ready(linear_mlp_forward(x2, w1, b1, w2, b2))
    ref2 = _reference(x2, w1, b1, w2, b2)
    assert out2.shape == (B2, output_dim)
    assert jnp.allclose(out2, ref2, atol=2e-2, rtol=0.0), float(jnp.max(jnp.abs(out2 - ref2)))

    print("KERNEL_OK")
</pallas_src>

<mosaic_0001>
module attributes {stable_mosaic.version = 11 : i64} {
  func.func @_mlp_kernel(%arg0: i32, %arg1: memref<8x32xf32, #tpu.memory_space<vmem>>, %arg2: memref<32x128xbf16, #tpu.memory_space<vmem>>, %arg3: memref<1x128xf32, #tpu.memory_space<vmem>>, %arg4: memref<128x2xbf16, #tpu.memory_space<vmem>>, %arg5: memref<1x2xf32, #tpu.memory_space<vmem>>, %arg6: memref<8x2xf32, #tpu.memory_space<vmem>>) attributes {dimension_semantics = [#tpu.dimension_semantics<parallel>], iteration_bounds = array<i64: 1>, scalar_prefetch = 0 : i64, scratch_operands = 0 : i64, tpu.core_type = #tpu.core_type<tc>, window_params = [{transform_indices = @transform_0, window_bounds = array<i64: 8, 32>}, {pipeline_mode = #tpu.pipeline_mode<synchronous>, transform_indices = @transform_1, window_bounds = array<i64: 32, 128>}, {pipeline_mode = #tpu.pipeline_mode<synchronous>, transform_indices = @transform_2, window_bounds = array<i64: 1, 128>}, {pipeline_mode = #tpu.pipeline_mode<synchronous>, transform_indices = @transform_3, window_bounds = array<i64: 128, 2>}, {pipeline_mode = #tpu.pipeline_mode<synchronous>, transform_indices = @transform_4, window_bounds = array<i64: 1, 2>}, {transform_indices = @transform_5, window_bounds = array<i64: 8, 2>}]} {
    %c0 = arith.constant 0 : index
    %c0_0 = arith.constant 0 : index
    %0 = vector.load %arg1[%c0, %c0_0] : memref<8x32xf32, #tpu.memory_space<vmem>>, vector<8x32xf32>
    %1 = arith.truncf %0 : vector<8x32xf32> to vector<8x32xbf16>
    %c0_1 = arith.constant 0 : index
    %c0_2 = arith.constant 0 : index
    %2 = vector.load %arg2[%c0_1, %c0_2] : memref<32x128xbf16, #tpu.memory_space<vmem>>, vector<32x128xbf16>
    %cst = arith.constant dense<0.000000e+00> : vector<8x128xf32>
    %3 = tpu.matmul %1, %2, %cst {dimension_numbers = #tpu.dot_dimension_numbers<[1], [0], [0], [1], [0, 0, 1, 1], [], []>} : vector<8x32xbf16>, vector<32x128xbf16>, vector<8x128xf32> -> vector<8x128xf32>
    %c0_3 = arith.constant 0 : index
    %c0_4 = arith.constant 0 : index
    %4 = vector.load %arg3[%c0_3, %c0_4] : memref<1x128xf32, #tpu.memory_space<vmem>>, vector<1x128xf32>
    %5 = vector.broadcast %4 : vector<1x128xf32> to vector<8x128xf32>
    %6 = arith.addf %3, %5 : vector<8x128xf32>
    %cst_5 = arith.constant 0.000000e+00 : f32
    %7 = vector.broadcast %cst_5 : f32 to vector<8x128xf32>
    %8 = arith.maximumf %6, %7 : vector<8x128xf32>
    %9 = arith.truncf %8 : vector<8x128xf32> to vector<8x128xbf16>
    %c0_6 = arith.constant 0 : index
    %c0_7 = arith.constant 0 : index
    %10 = vector.load %arg4[%c0_6, %c0_7] : memref<128x2xbf16, #tpu.memory_space<vmem>>, vector<128x2xbf16>
    %cst_8 = arith.constant dense<0.000000e+00> : vector<8x2xf32>
    %11 = tpu.matmul %9, %10, %cst_8 {dimension_numbers = #tpu.dot_dimension_numbers<[1], [0], [0], [1], [0, 0, 1, 1], [], []>} : vector<8x128xbf16>, vector<128x2xbf16>, vector<8x2xf32> -> vector<8x2xf32>
    %c0_9 = arith.constant 0 : index
    %c0_10 = arith.constant 0 : index
    %12 = vector.load %arg5[%c0_9, %c0_10] : memref<1x2xf32, #tpu.memory_space<vmem>>, vector<1x2xf32>
    %13 = vector.broadcast %12 : vector<1x2xf32> to vector<8x2xf32>
    %14 = arith.addf %11, %13 : vector<8x2xf32>
    %15 = arith.negf %14 : vector<8x2xf32>
    %16 = math.exp %15 : vector<8x2xf32>
    %cst_11 = arith.constant 1.000000e+00 : f32
    %17 = vector.broadcast %cst_11 : f32 to vector<8x2xf32>
    %18 = arith.addf %17, %16 : vector<8x2xf32>
    %19 = arith.divf %17, %18 : vector<8x2xf32>
    %c0_12 = arith.constant 0 : index
    %c0_13 = arith.constant 0 : index
    %20 = vector.load %arg6[%c0_12, %c0_13] : memref<8x2xf32, #tpu.memory_space<vmem>>, vector<8x2xf32>
    tpu.vector_store %arg6[%c0_12, %c0_13], %19 {strides = array<i32>} : memref<8x2xf32, #tpu.memory_space<vmem>>, vector<8x2xf32>,
    return
  }
  func.func @transform_0(%arg0: i32) -> (i32, i32) {
    %c0_i32 = arith.constant 0 : i32
    %c0_i32_0 = arith.constant 0 : i32
    return %arg0, %c0_i32 : i32, i32
  }
  func.func @transform_1(%arg0: i32) -> (i32, i32) {
    %c0_i32 = arith.constant 0 : i32
    %c0_i32_0 = arith.constant 0 : i32
    %c0_i32_1 = arith.constant 0 : i32
    return %c0_i32, %c0_i32_0 : i32, i32
  }
  func.func @transform_2(%arg0: i32) -> (i32, i32) {
    %c0_i32 = arith.constant 0 : i32
    %c0_i32_0 = arith.constant 0 : i32
    %c0_i32_1 = arith.constant 0 : i32
    return %c0_i32, %c0_i32_0 : i32, i32
  }
  func.func @transform_3(%arg0: i32) -> (i32, i32) {
    %c0_i32 = arith.constant 0 : i32
    %c0_i32_0 = arith.constant 0 : i32
    %c0_i32_1 = arith.constant 0 : i32
    return %c0_i32, %c0_i32_0 : i32, i32
  }
  func.func @transform_4(%arg0: i32) -> (i32, i32) {
    %c0_i32 = arith.constant 0 : i32
    %c0_i32_0 = arith.constant 0 : i32
    %c0_i32_1 = arith.constant 0 : i32
    return %c0_i32, %c0_i32_0 : i32, i32
  }
  func.func @transform_5(%arg0: i32) -> (i32, i32) {
    %c0_i32 = arith.constant 0 : i32
    %c0_i32_0 = arith.constant 0 : i32
    return %arg0, %c0_i32 : i32, i32
  }
}

</mosaic_0001>

<llo_original>
// kernel: tpu_custom_call.1
$region0: #{tpu_custom_call.1}
  #allocation0 [shape = 'u32[]', space=smem, size = 0x4, offset = 0x4, fixed_abs, tag = 'smem constant byte address 0x4 - core index']
  #allocation1 [shape = 'u32[144,128]{1,0:T(1,128)}', space=vmem, size = 0x12000, scoped, tag = 'internal scratch']
  %s0 = inlined_call_operand.vmem [shape: f32[8,32], index: 0, kind: input, shape index: {}]
  %s1 = inlined_call_operand.vmem [shape: bf16[32,128], index: 1, kind: input, shape index: {}]
  %s2 = inlined_call_operand.vmem [shape: f32[1,128], index: 2, kind: input, shape index: {}]
  %s3 = inlined_call_operand.vmem [shape: bf16[128,2], index: 3, kind: input, shape index: {}]
  %s4 = inlined_call_operand.vmem [shape: f32[1,2], index: 4, kind: input, shape index: {}]
  %s5 = inlined_call_operand.vmem [shape: f32[8,2], index: 5, kind: output, shape index: {}]
  %s6 = sld [smem:[#allocation0]]
  $region30: #{tpu_custom_call.1} parent=0
    _
  %s8 = ssub.s32 1, %s6
  %s9 = scalar_select 0, %s8, %s6
  // Predicated region
  $region2: #{tpu_custom_call.1} parent=0 // pred_check
    _
  $region3: #{tpu_custom_call.1} parent=0 // pred_check_branch
    %11 = sbr.rel (0) target = $region5
  $region4: #{tpu_custom_call.1} parent=0 // pred_region
    _
  $region5: #{tpu_custom_call.1} parent=0 // pred_fallthru
    _
  // Predicated region
  $region6: #{tpu_custom_call.1} parent=0 // pred_check
    _
  $region7: #{tpu_custom_call.1} parent=0 // pred_check_branch
    %13 = sbr.rel (0) target = $region9
  $region8: #{tpu_custom_call.1} parent=0 // pred_region
    _
  $region9: #{tpu_custom_call.1} parent=0 // pred_fallthru
    _
  // Predicated region
  $region10: #{tpu_custom_call.1} parent=0 // pred_check
    _
  $region11: #{tpu_custom_call.1} parent=0 // pred_check_branch
    %15 = sbr.rel (0) target = $region13
  $region12: #{tpu_custom_call.1} parent=0 // pred_region
    _
  $region13: #{tpu_custom_call.1} parent=0 // pred_fallthru
    _
  // Predicated region
  $region14: #{tpu_custom_call.1} parent=0 // pred_check
    _
  $region15: #{tpu_custom_call.1} parent=0 // pred_check_branch
    %17 = sbr.rel (0) target = $region17
  $region16: #{tpu_custom_call.1} parent=0 // pred_region
    _
  $region17: #{tpu_custom_call.1} parent=0 // pred_fallthru
    _
  // Predicated region
  $region18: #{tpu_custom_call.1} parent=0 // pred_check
    _
  $region19: #{tpu_custom_call.1} parent=0 // pred_check_branch
    %19 = sbr.rel (0) target = $region21
  $region20: #{tpu_custom_call.1} parent=0 // pred_region
    _
  $region21: #{tpu_custom_call.1} parent=0 // pred_fallthru
    _
  %v21 = vld [vmem:[%s0] sm:$0xff]
  %v22 = vpack.c.bf16 %v21, %v21
  %v23 = vld [vmem:[%s1] sm:$0xf]
  %v24 = vld [vmem:[%s1 + $0x4] sm:$0xf]
  %v25 = vld [vmem:[%s1 + $0x8] sm:$0xf]
  %v26 = vld [vmem:[%s1 + $0xc] sm:$0xf]
  %v27 = vld [vmem:[%s2] sm:$0x1]
  %v29 = vlaneseq
  %v30 = vshrl.u32 %v29, 7
  %v31 = vsub.s32 0, %v30
  %v32 = vrot.slane %v27, %v31
  %v38 = vunpack.c.l.b16 %v23
  %v39 = vunpack.c.l.b16 %v24
  %v40 = vunpack.c.l.b16 %v25
  %v41 = vunpack.c.l.b16 %v26
  %v42 = vpack.c.b16 %v39, %v38
  %v43 = vpack.c.b16 %v41, %v40
  %vm46 = vcmask 261120
  %v48 = vsel %vm46, %v22, 0
  %50 = vmatprep.subr.bf16.mxu0 0
  %51 = vmatpush1.bf16.msra.mxu0 %v42
  %52 = vmatprep.subr.bf16.mxu0 0
  %53 = vmatpush1.bf16.msra.mxu0 %v43
  %54 = vmatprep.subr.bf16.mxu0 0
  %55 = vmatpush1.bf16.msra.mxu0 0
  %56 = vmatprep.subr.bf16.mxu0 0
  %57 = vmatpush1.bf16.msra.mxu0 0
  %58 = vmatprep.subr.bf16.mxu0 0
  %59 = vmatpush1.bf16.msra.mxu0 0
  %60 = vmatprep.subr.bf16.mxu0 0
  %61 = vmatpush1.bf16.msra.mxu0 0
  %62 = vmatprep.subr.bf16.mxu0 0
  %63 = vmatpush1.bf16.msra.mxu0 0
  %64 = vmatprep.subr.bf16.mxu0 0
  %65 = vmatpush1.bf16.msra.mxu0 0
  %66 = vmatprep.subr.bf16.mxu0 0
  %67 = vmatpush1.bf16.msra.mxu0 0
  %68 = vmatprep.subr.bf16.mxu0 0
  %69 = vmatpush1.bf16.msra.mxu0 0
  %70 = vmatprep.subr.bf16.mxu0 0
  %71 = vmatpush1.bf16.msra.mxu0 0
  %72 = vmatprep.subr.bf16.mxu0 0
  %73 = vmatpush1.bf16.msra.mxu0 0
  %74 = vmatprep.subr.bf16.mxu0 0
  %75 = vmatpush1.bf16.msra.mxu0 0
  %76 = vmatprep.subr.bf16.mxu0 0
  %77 = vmatpush1.bf16.msra.mxu0 0
  %78 = vmatprep.subr.bf16.mxu0 0
  %79 = vmatpush1.bf16.msra.mxu0 0
  %80 = vmatprep.subr.bf16.mxu0 0
  %81 = vmatpush1.bf16.msra.mxu0 0
  %82 = vmatprep.mubr.bf16.mxu0 0
  %83 = vmatmul.mubr.bf16.gmra.mrb[0].mxu0 %v48
  %v84 = vpop.f32.mrb[0].mxu0
  %v85 = vadd.f32 %v32, %v84
  %v86 = vpop.f32.mrb[0].mxu0
  %v87 = vpop.f32.mrb[0].mxu0
  %v88 = vpop.f32.mrb[0].mxu0
  %89 = vdwg.mxu0
  %v90 = vmax.f32 %v85, 0.0
  %v91 = vpack.c.bf16 %v90, %v90
  %v92 = vld [vmem:[%s3] sm:$0xf]
  %v93 = vld [vmem:[%s3 + $0x4] sm:$0xf]
  %v94 = vld [vmem:[%s3 + $0x8] sm:$0xf]
  %v95 = vld [vmem:[%s3 + $0xc] sm:$0xf]
  %v96 = vld [vmem:[%s3 + $0x10] sm:$0xf]
  %v97 = vld [vmem:[%s3 + $0x14] sm:$0xf]
  %v98 = vld [vmem:[%s3 + $0x18] sm:$0xf]
  %v99 = vld [vmem:[%s3 + $0x1c] sm:$0xf]
  %v100 = vld [vmem:[%s3 + $0x20] sm:$0xf]
  %v101 = vld [vmem:[%s3 + $0x24] sm:$0xf]
  %v102 = vld [vmem:[%s3 + $0x28] sm:$0xf]
  %v103 = vld [vmem:[%s3 + $0x2c] sm:$0xf]
  %v104 = vld [vmem:[%s3 + $0x30] sm:$0xf]
  %v105 = vld [vmem:[%s3 + $0x34] sm:$0xf]
  %v106 = vld [vmem:[%s3 + $0x38] sm:$0xf]
  %v107 = vld [vmem:[%s3 + $0x3c] sm:$0xf]
  %v108 = vld [vmem:[%s4] sm:$0x1]
  %v110 = vlaneseq
  %v111 = vshrl.u32 %v110, 7
  %v112 = vsub.s32 0, %v111
  %v113 = vrot.slane %v108, %v112
  %v131 = vunpack.c.l.b16 %v92
  %v132 = vunpack.c.l.b16 %v93
  %v133 = vunpack.c.l.b16 %v94
  %v134 = vunpack.c.l.b16 %v95
  %v135 = vunpack.c.l.b16 %v96
  %v136 = vunpack.c.l.b16 %v97
  %v137 = vunpack.c.l.b16 %v98
  %v138 = vunpack.c.l.b16 %v99
  %v139 = vunpack.c.l.b16 %v100
  %v140 = vunpack.c.l.b16 %v101
  %v141 = vunpack.c.l.b16 %v102
  %v142 = vunpack.c.l.b16 %v103
  %v143 = vunpack.c.l.b16 %v104
  %v144 = vunpack.c.l.b16 %v105
  %v145 = vunpack.c.l.b16 %v106
  %v146 = vunpack.c.l.b16 %v107
  %v147 = vpack.c.b16 %v132, %v131
  %v148 = vpack.c.b16 %v134, %v133
  %v149 = vpack.c.b16 %v136, %v135
  %v150 = vpack.c.b16 %v138, %v137
  %v151 = vpack.c.b16 %v140, %v139
  %v152 = vpack.c.b16 %v142, %v141
  %v153 = vpack.c.b16 %v144, %v143
  %v154 = vpack.c.b16 %v146, %v145
  %163 = vmatprep.subr.bf16.mxu0 0
  %164 = vmatpush1.bf16.msra.mxu0 %v147
  %165 = vmatprep.subr.bf16.mxu0 0
  %166 = vmatpush1.bf16.msra.mxu0 %v148
  %167 = vmatprep.subr.bf16.mxu0 0
  %168 = vmatpush1.bf16.msra.mxu0 %v149
  %169 = vmatprep.subr.bf16.mxu0 0
  %170 = vmatpush1.bf16.msra.mxu0 %v150
  %171 = vmatprep.subr.bf16.mxu0 0
  %172 = vmatpush1.bf16.msra.mxu0 %v151
  %173 = vmatprep.subr.bf16.mxu0 0
  %174 = vmatpush1.bf16.msra.mxu0 %v152
  %175 = vmatprep.subr.bf16.mxu0 0
  %176 = vmatpush1.bf16.msra.mxu0 %v153
  %177 = vmatprep.subr.bf16.mxu0 0
  %178 = vmatpush1.bf16.msra.mxu0 %v154
  %179 = vmatprep.subr.bf16.mxu0 0
  %180 = vmatpush1.bf16.msra.mxu0 0
  %181 = vmatprep.subr.bf16.mxu0 0
  %182 = vmatpush1.bf16.msra.mxu0 0
  %183 = vmatprep.subr.bf16.mxu0 0
  %184 = vmatpush1.bf16.msra.mxu0 0
  %185 = vmatprep.subr.bf16.mxu0 0
  %186 = vmatpush1.bf16.msra.mxu0 0
  %187 = vmatprep.subr.bf16.mxu0 0
  %188 = vmatpush1.bf16.msra.mxu0 0
  %189 = vmatprep.subr.bf16.mxu0 0
  %190 = vmatpush1.bf16.msra.mxu0 0
  %191 = vmatprep.subr.bf16.mxu0 0
  %192 = vmatpush1.bf16.msra.mxu0 0
  %193 = vmatprep.subr.bf16.mxu0 0
  %194 = vmatpush1.bf16.msra.mxu0 0
  %195 = vmatprep.mubr.bf16.mxu0 0
  %196 = vmatmul.mubr.bf16.gmra.mrb[0].mxu0 %v91
  %v197 = vpop.f32.mrb[0].mxu0
  %v198 = vadd.f32 %v113, %v197
  %v199 = vpop.f32.mrb[0].mxu0
  %v200 = vpop.f32.mrb[0].mxu0
  %v201 = vpop.f32.mrb[0].mxu0
  %202 = vdwg.mxu0
  %v203 = vxor.u32 %v198, 2147483648
  %v204 = vmul.f32 %v203, 1.442695
  %v205 = vpow.pop %v204
  %v206 = vadd.f32 %v205, 1.0
  %v207 = vrcp.pop %v206
  %v208 = vmul.f32 1.0, %v207
  %vm209 = vcmask 15360
  %210 = vst.msk [vmem:[%s5] sm:$0xff] %vm209, %v208
  // Predicated region
  $region22: #{tpu_custom_call.1} parent=0 // pred_check
    _
  $region23: #{tpu_custom_call.1} parent=0 // pred_check_branch
    %212 = sbr.rel (0) target = $region25
  $region24: #{tpu_custom_call.1} parent=0 // pred_region
    _
  $region25: #{tpu_custom_call.1} parent=0 // pred_fallthru
    _
  // Predicated region
  $region26: #{tpu_custom_call.1} parent=0 // pred_check
    _
  $region27: #{tpu_custom_call.1} parent=0 // pred_check_branch
    %214 = sbr.rel (0) target = $region29
  $region28: #{tpu_custom_call.1} parent=0 // pred_region
    _
  $region29: #{tpu_custom_call.1} parent=0 // pred_fallthru
    _

</llo_original>
